<compile_context>
chip_gen: v7x
topology: tpu7x:2x2x1
jax: 0.10.0
libtpu: 0.0.40
codegen_flags: <defaults>
</compile_context>

<pallas_src>
import functools

import jax
import jax.numpy as jnp
from jax.experimental import pallas as pl
from jax.experimental.pallas import tpu as pltpu

_LANE = 128
_MAX_TILE_ROWS = 8192              # (8192, 128) f32 block = 4 MiB
_SINGLE_BLOCK_MAX_ELEMS = 1 << 18  # 256K f32 elems (1 MiB) -> beyond this, stream


def _sq_plus_eps_kernel(x_ref, o_ref, *, eps: float):
    # x_ref / o_ref: VMEM tiles.  Square in f32 regardless of input dtype.
    x = x_ref[...].astype(jnp.float32)
    o_ref[...] = (x * x + eps).astype(o_ref.dtype)


def _single_block_call(x2d: jax.Array, eps: float) -> jax.Array:
    """grid=() whole-array block.  Block shape == array shape, so the (8,128)
    divisibility constraint does not apply and no padding is needed."""
    return pl.pallas_call(
        functools.partial(_sq_plus_eps_kernel, eps=eps),
        out_shape=jax.ShapeDtypeStruct(x2d.shape, x2d.dtype),
        grid=(),
        in_specs=[pl.BlockSpec(x2d.shape, lambda: (0, 0))],
        out_specs=pl.BlockSpec(x2d.shape, lambda: (0, 0)),
    )(x2d)


def _streamed_call(x2d: jax.Array, eps: float) -> jax.Array:
    """1-D pipelined stream over a (rows, 128) slab.  Blocks up to 4 MiB but
    always >= 2 grid steps so prefetch/writeback overlap and v7x's two
    TensorCores both get work.  Final partial block is clipped automatically."""
    rows = x2d.shape[0]
    block_rows = min(_MAX_TILE_ROWS, pl.cdiv(pl.cdiv(rows, 2), 8) * 8)
    grid = (pl.cdiv(rows, block_rows),)
    return pl.pallas_call(
        functools.partial(_sq_plus_eps_kernel, eps=eps),
        out_shape=jax.ShapeDtypeStruct(x2d.shape, x2d.dtype),
        grid_spec=pltpu.PrefetchScalarGridSpec(
            num_scalar_prefetch=0,
            grid=grid,
            in_specs=[pl.BlockSpec((block_rows, _LANE), lambda i: (i, 0))],
            out_specs=pl.BlockSpec((block_rows, _LANE), lambda i: (i, 0)),
        ),
        compiler_params=pltpu.CompilerParams(
            dimension_semantics=("parallel",),
            # 2 arrays x 2 buffers x 4 MiB = 16 MiB max footprint; raise the
            # scoped limit so v5e's 16 MiB default has headroom too.
            vmem_limit_bytes=32 << 20,
        ),
    )(x2d)


def _forward_impl(hidden_scale: jax.Array, eps: float) -> jax.Array:
    n = hidden_scale.shape[0]
    eps = float(eps)

    if n % _LANE == 0:
        # Free reshape to a lane- and sublane-dense (rows, 128) slab:
        # no pad, no trailing slice, unmasked stores on full tiles.
        rows = n // _LANE
        x2d = hidden_scale.reshape(rows, _LANE)
        if n <= _SINGLE_BLOCK_MAX_ELEMS:
            out = _single_block_call(x2d, eps)
        else:
            out = _streamed_call(x2d, eps)
        return out.reshape(n)

    if n <= _SINGLE_BLOCK_MAX_ELEMS:
        # Realistic small / irregular N: present as a (1, N) view (free
        # reshape); block == full array dims, so no padding and no slicing.
        out = _single_block_call(hidden_scale.reshape(1, n), eps)
        return out.reshape(n)

    # Rare: huge N that is not a multiple of 128.  Pad only the lane dim
    # (<= 127 elements), stream, then trim.
    # TODO(synk): a 1-D BlockSpec stream would avoid this pad/slice round-trip.
    rows = pl.cdiv(n, _LANE)
    padded = rows * _LANE
    x2d = jnp.pad(hidden_scale, (0, padded - n)).reshape(rows, _LANE)
    out = _streamed_call(x2d, eps)
    return out.reshape(padded)[:n]


@functools.partial(jax.custom_vjp, nondiff_argnums=(1,))
def uncorrelated_variance_forward(hidden_scale: jax.Array, eps: float = 0.01) -> jax.Array:
    """square(hidden_scale) + eps, computed by a Pallas TPU kernel."""
    return _forward_impl(hidden_scale, eps)


def _uv_fwd(hidden_scale, eps):
    return _forward_impl(hidden_scale, eps), hidden_scale


def _uv_bwd(eps, hidden_scale, g):
    del eps
    return (2.0 * hidden_scale * g,)


uncorrelated_variance_forward.defvjp(_uv_fwd, _uv_bwd)


class UncorrelatedVarianceParameterJAX:
    """JAX/Pallas analogue of the PyTorch UncorrelatedVarianceParameter."""

    def __init__(self, num_out_features: int):
        self.num_out_features = num_out_features
        self.num_in_features = num_out_features
        # Deterministic init, matching nn.Parameter(torch.ones(...)).
        self.hidden_scale = jnp.ones((self.num_in_features,), dtype=jnp.float32)
        self.eps = 0.01

    def __call__(self) -> jax.Array:
        return uncorrelated_variance_forward(self.hidden_scale, self.eps)


if __name__ == "__main__":
    num_out_features = 32

    module = UncorrelatedVarianceParameterJAX(num_out_features)

    # Forward with the default (ones) parameter — must equal 1.01 everywhere.
    out_init = jax.block_until_ready(module())
    assert out_init.shape == (num_out_features,)
    assert out_init.dtype == jnp.float32
    assert jnp.allclose(
        out_init, jnp.full((num_out_features,), 1.01, dtype=jnp.float32), atol=1e-6
    )

    # Non-trivial parameter value (as if after training), PRNGKey(0).
    key = jax.random.PRNGKey(0)
    trained_scale = jax.random.normal(key, (num_out_features,), dtype=jnp.float32)
    out_rand = jax.block_until_ready(uncorrelated_variance_forward(trained_scale, 0.01))
    assert jnp.allclose(out_rand, jnp.square(trained_scale) + 0.01, atol=1e-6)

    # Lane/sublane-dense path: N a multiple of 128 (no pad, no slice).
    scale_256 = jax.random.normal(jax.random.PRNGKey(0), (256,), dtype=jnp.float32)
    out_256 = jax.block_until_ready(uncorrelated_variance_forward(scale_256, 0.01))
    assert jnp.allclose(out_256, jnp.square(scale_256) + 0.01, atol=1e-6)

    # Irregular N (not a multiple of 128): (1, N) full-block path.
    scale_300 = jax.random.normal(jax.random.PRNGKey(0), (300,), dtype=jnp.float32)
    out_300 = jax.block_until_ready(uncorrelated_variance_forward(scale_300, 0.01))
    assert out_300.shape == (300,)
    assert jnp.allclose(out_300, jnp.square(scale_300) + 0.01, atol=1e-6)

    # Gradient through the Pallas forward (custom VJP: d/ds = 2*s).
    grad = jax.block_until_ready(
        jax.grad(lambda s: jnp.sum(uncorrelated_variance_forward(s, 0.01)))(trained_scale)
    )
    assert jnp.allclose(grad, 2.0 * trained_scale, atol=1e-5)

    print("KERNEL_OK")
</pallas_src>

<mosaic_0001>
module attributes {stable_mosaic.version = 11 : i64} {
  func.func @_sq_plus_eps_kernel(%arg0: memref<1x32xf32, #tpu.memory_space<vmem>>, %arg1: memref<1x32xf32, #tpu.memory_space<vmem>>) attributes {dimension_semantics = [], scalar_prefetch = 0 : i64, scratch_operands = 0 : i64, tpu.core_type = #tpu.core_type<tc>} {
    %c0 = arith.constant 0 : index
    %c0_0 = arith.constant 0 : index
    %0 = vector.load %arg0[%c0, %c0_0] : memref<1x32xf32, #tpu.memory_space<vmem>>, vector<1x32xf32>
    %1 = arith.mulf %0, %0 : vector<1x32xf32>
    %cst = arith.constant 0.00999999977 : f32
    %2 = vector.broadcast %cst : f32 to vector<1x32xf32>
    %3 = arith.addf %1, %2 : vector<1x32xf32>
    %c0_1 = arith.constant 0 : index
    %c0_2 = arith.constant 0 : index
    %4 = vector.load %arg1[%c0_1, %c0_2] : memref<1x32xf32, #tpu.memory_space<vmem>>, vector<1x32xf32>
    tpu.vector_store %arg1[%c0_1, %c0_2], %3 {strides = array<i32>} : memref<1x32xf32, #tpu.memory_space<vmem>>, vector<1x32xf32>,
    return
  }
}

</mosaic_0001>

<llo_original>
// kernel: tpu_custom_call.1
$region0: #{tpu_custom_call.1}
  #allocation0 [shape = 'u32[]', space=smem, size = 0x4, offset = 0x4, fixed_abs, tag = 'smem constant byte address 0x4 - core index']
  #allocation1 [shape = 'u32[144,128]{1,0:T(1,128)}', space=vmem, size = 0x12000, scoped, tag = 'internal scratch']
  %s0 = inlined_call_operand.hbm [shape: f32[1,32], index: 0, kind: input, shape index: {}]
  %s1 = inlined_call_operand.hbm [shape: f32[1,32], index: 1, kind: output, shape index: {}]
  %s2 = sld [smem:[#allocation0]]
  $region18: #{tpu_custom_call.1} parent=0
    _
  %s4 = ssub.s32 1, %s2
  %s5 = scalar_select 0, %s4, %s2
  $region1: #{tpu_custom_call.1} parent=0
    #allocation2 [shape = 'u8[512]{0}', space=vmem, size = 0x400, scoped, tag = 'input window, operand 0, single buffered']
    #allocation3 [shape = 's32[1]{0}', space=sflag, size = 0x4, scoped, tag = 'scoped memory for tpu_custom_call.1']
    #allocation4 [shape = 's32[1]{0}', space=sflag, size = 0x4, scoped, tag = 'scoped memory for tpu_custom_call.1']
    #allocation5 [shape = 'u8[512]{0}', space=vmem, size = 0x400, scoped, tag = 'output window, operand 0, single buffered']
    %6 = vsyncpa [#allocation3], 0
    %7 = vsyncpa [#allocation4], 0
    // Predicated region
    $region2: #{tpu_custom_call.1} parent=1 // pred_check
      _
    $region3: #{tpu_custom_call.1} parent=1 // pred_check_branch
      %9 = sbr.rel (0) target = $region5
    $region4: #{tpu_custom_call.1} parent=1 // pred_region
      %s11 = ssub.s32 16, 16
      %12 = vsyncadd [#allocation3], %s11
      %s14 = sshll.u32 [#allocation2], 4
      %s15 = int_to_ptr.vmem [resolvable:$true] %s14
      %17 = dma.hbm_to_vmem [thread:$0]  %s0, 16, %s15, [#allocation3]
    $region5: #{tpu_custom_call.1} parent=1 // pred_fallthru
      _
    // Predicated region
    $region6: #{tpu_custom_call.1} parent=1 // pred_check
      _
    $region7: #{tpu_custom_call.1} parent=1 // pred_check_branch
      %19 = sbr.rel (0) target = $region9
    $region8: #{tpu_custom_call.1} parent=1 // pred_region
      %20 = dma.done [#allocation3], 16
    $region9: #{tpu_custom_call.1} parent=1 // pred_fallthru
      _
    %v21 = vld [vmem:[#allocation2] sm:$0x1]
    %v22 = vmul.f32 %v21, %v21
    %v23 = vadd.f32 %v22, 0.01
    %vm24 = vcmask 253952
    %25 = vst.msk [vmem:[#allocation5] sm:$0x1] %vm24, %v23
    // Predicated region
    $region10: #{tpu_custom_call.1} parent=1 // pred_check
      _
    $region11: #{tpu_custom_call.1} parent=1 // pred_check_branch
      %27 = sbr.rel (0) target = $region13
    $region12: #{tpu_custom_call.1} parent=1 // pred_region
      %s29 = ssub.s32 16, 16
      %30 = vsyncadd [#allocation4], %s29
      %s32 = sshll.u32 [#allocation5], 4
      %s33 = int_to_ptr.vmem [resolvable:$true] %s32
      %35 = dma.vmem_to_hbm [thread:$0]  %s33, 16, %s1, [#allocation4]
    $region13: #{tpu_custom_call.1} parent=1 // pred_fallthru
      _
    // Predicated region
    $region14: #{tpu_custom_call.1} parent=1 // pred_check
      _
    $region15: #{tpu_custom_call.1} parent=1 // pred_check_branch
      %37 = sbr.rel (0) target = $region17
    $region16: #{tpu_custom_call.1} parent=1 // pred_region
      %38 = dma.done [#allocation4], 16
    $region17: #{tpu_custom_call.1} parent=1 // pred_fallthru
      _
    %39 = vsyncpa [#allocation3], 1
    %40 = vsyncpa [#allocation4], 1

</llo_original>
